<compile_context>
chip_gen: v7x
topology: tpu7x:2x2x1
jax: 0.10.0
libtpu: 0.0.40
codegen_flags: <defaults>
</compile_context>

<pallas_src>
import functools
import math

import jax
import jax.numpy as jnp
from jax.experimental import pallas as pl
from jax.experimental.pallas import tpu as pltpu


def _self_attention_kernel(x_ref, wqkv_ref, wu_ref, bu_ref, o_ref, attn_ref, *, heads):
    # x_ref:    (b, l, d)       f32 input (cast to bf16 in-kernel)
    # wqkv_ref: (d, 3*h*d)      bf16 fused [Wq*1/sqrt(d) | Wk | Wv] projection weights
    # wu_ref:   (h*d, d)        bf16 fused unifyheads weight (transposed)
    # bu_ref:   (1, d)          f32 unifyheads bias
    # o_ref:    (b, l, d)       output
    # attn_ref: (b*l, h*d)      bf16 VMEM scratch slab for concatenated head outputs
    b, l, d = x_ref.shape
    h = heads
    hd = h * d

    # Fold (b, l) into the matmul rows — whole batch in one step.
    x2 = x_ref[...].reshape(b * l, d).astype(jnp.bfloat16)                    # [b*l, d]

    # ONE fused QKV projection matmul (f32 accumulation).
    qkv = jnp.dot(x2, wqkv_ref[...], preferred_element_type=jnp.float32)      # [b*l, 3*h*d]

    # 128-aligned lane slices (vreg boundaries); leading-dim reshape is free.
    q_all = qkv[:, 0 * hd:1 * hd].reshape(b, l, hd)   # already scaled by 1/sqrt(d)
    k_all = qkv[:, 1 * hd:2 * hd].reshape(b, l, hd)
    v_all = qkv[:, 2 * hd:3 * hd].reshape(b, l, hd)

    # Per-head attention, batched over b with 3-D einsums. Scores/softmax stay in f32.
    for i in range(h):
        sl = slice(i * d, (i + 1) * d)
        q = q_all[:, :, sl].astype(jnp.bfloat16)      # [b, l, d]
        k = k_all[:, :, sl].astype(jnp.bfloat16)      # [b, l, d]
        v = v_all[:, :, sl].astype(jnp.bfloat16)      # [b, l, d]

        s = jnp.einsum('bld,bmd->blm', q, k,
                       preferred_element_type=jnp.float32)                    # [b, l, l]
        m = jnp.max(s, axis=-1, keepdims=True)
        p = jnp.exp(s - m)                                                    # unnormalized
        denom = jnp.sum(p, axis=-1, keepdims=True)                            # [b, l, 1]

        o_h = jnp.einsum('blm,bmd->bld', p.astype(jnp.bfloat16), v,
                         preferred_element_type=jnp.float32)                  # [b, l, d]
        # Deferred softmax normalization: one EUP reciprocal on the [b,l,1] row sums.
        o_h = o_h * pl.reciprocal(denom, approx=True)

        # Write the head output into the lane-dense slab at its lane offset
        # (no jnp.concatenate relayout).
        attn_ref[:, sl] = o_h.reshape(b * l, d).astype(attn_ref.dtype)

    # ONE fused output projection matmul over the lane-dense [b*l, h*d] slab.
    out = jnp.dot(attn_ref[...], wu_ref[...],
                  preferred_element_type=jnp.float32) + bu_ref[...]           # [b*l, d]
    o_ref[...] = out.reshape(b, l, d).astype(o_ref.dtype)


def pack_self_attention_params(wq_weight, wk_weight, wv_weight, wu_weight, wu_bias, heads):
    """One-time weight packing (hoisted out of the per-call path).

    PyTorch layout: w{q,k,v}_weight: [h*d, d]; wu_weight: [d, h*d]; wu_bias: [d].
    Returns (w_qkv [d, 3*h*d] bf16, w_u [h*d, d] bf16, b_u [1, d] f32).
    """
    d = wq_weight.shape[1]
    inv_sqrt_d = 1.0 / math.sqrt(d)
    # q = x @ Wq.T etc.; head i owns output columns i*d:(i+1)*d. Fold 1/sqrt(d) into Wq.
    w_qkv = jnp.concatenate(
        [wq_weight.T * inv_sqrt_d, wk_weight.T, wv_weight.T], axis=1
    ).astype(jnp.bfloat16)                                   # [d, 3*h*d]
    w_u = wu_weight.T.astype(jnp.bfloat16)                   # [h*d, d]
    b_u = wu_bias.reshape(1, -1).astype(jnp.float32)         # [1, d]
    return w_qkv, w_u, b_u


@functools.partial(jax.jit, static_argnames=("heads",))
def self_attention_pallas(x, w_qkv, w_u, b_u, heads):
    """x: [b, l, d] f32; packed weights from pack_self_attention_params."""
    b, l, d = x.shape
    hd = heads * d
    kernel = functools.partial(_self_attention_kernel, heads=heads)
    return pl.pallas_call(
        kernel,
        out_shape=jax.ShapeDtypeStruct((b, l, d), x.dtype),
        scratch_shapes=[pltpu.VMEM((b * l, hd), jnp.bfloat16)],
    )(x, w_qkv, w_u, b_u)


def self_attention_ref(x, wq_weight, wk_weight, wv_weight, wu_weight, wu_bias, heads):
    """Pure-JAX f32 reference mirroring the PyTorch forward exactly."""
    b, l, d = x.shape
    h = heads
    q = (x @ wq_weight.T).reshape(b, l, h, d).transpose(0, 2, 1, 3).reshape(b * h, l, d)
    k = (x @ wk_weight.T).reshape(b, l, h, d).transpose(0, 2, 1, 3).reshape(b * h, l, d)
    v = (x @ wv_weight.T).reshape(b, l, h, d).transpose(0, 2, 1, 3).reshape(b * h, l, d)
    s = jnp.einsum('bij,bkj->bik', q, k) / jnp.sqrt(jnp.float32(d))
    w = jax.nn.softmax(s, axis=-1)
    out = jnp.einsum('bik,bkj->bij', w, v).reshape(b, h, l, d)
    out = out.transpose(0, 2, 1, 3).reshape(b, l, h * d)
    return out @ wu_weight.T + wu_bias


if __name__ == "__main__":
    b, l, d, h = 2, 8, 32, 4

    key = jax.random.PRNGKey(0)
    k_x, k_q, k_k, k_v, k_u, k_b = jax.random.split(key, 6)

    x = jax.random.normal(k_x, (b, l, d), dtype=jnp.float32)

    # PyTorch nn.Linear default init: U(-1/sqrt(fan_in), 1/sqrt(fan_in))
    bq = 1.0 / math.sqrt(d)
    bu_bound = 1.0 / math.sqrt(h * d)
    wq_weight = jax.random.uniform(k_q, (h * d, d), jnp.float32, -bq, bq)
    wk_weight = jax.random.uniform(k_k, (h * d, d), jnp.float32, -bq, bq)
    wv_weight = jax.random.uniform(k_v, (h * d, d), jnp.float32, -bq, bq)
    wu_weight = jax.random.uniform(k_u, (d, h * d), jnp.float32, -bu_bound, bu_bound)
    wu_bias = jax.random.uniform(k_b, (d,), jnp.float32, -bu_bound, bu_bound)

    # Hoisted, one-time weight packing (init-time, not per-call).
    w_qkv, w_u, b_u = pack_self_attention_params(
        wq_weight, wk_weight, wv_weight, wu_weight, wu_bias, h)
    w_qkv, w_u, b_u = jax.block_until_ready((w_qkv, w_u, b_u))

    out = self_attention_pallas(x, w_qkv, w_u, b_u, h)
    out = jax.block_until_ready(out)

    ref = self_attention_ref(x, wq_weight, wk_weight, wv_weight, wu_weight, wu_bias, h)
    assert out.shape == (b, l, d), out.shape
    # bf16 matmul operands (f32 accumulation) + approx reciprocal => looser tolerance
    # than pure-f32, still tight relative to activation magnitudes.
    err = float(jnp.max(jnp.abs(out - ref)))
    assert jnp.allclose(out, ref, atol=2e-2, rtol=2e-2), err

    print("KERNEL_OK")
</pallas_src>

<mosaic_0001>
module attributes {stable_mosaic.version = 11 : i64} {
  func.func @_self_attention_kernel(%arg0: memref<2x8x32xf32, #tpu.memory_space<vmem>>, %arg1: memref<32x384xbf16, #tpu.memory_space<vmem>>, %arg2: memref<128x32xbf16, #tpu.memory_space<vmem>>, %arg3: memref<1x32xf32, #tpu.memory_space<vmem>>, %arg4: memref<2x8x32xf32, #tpu.memory_space<vmem>>, %arg5: memref<16x128xbf16, #tpu.memory_space<vmem>>) attributes {dimension_semantics = [], scalar_prefetch = 0 : i64, scratch_operands = 1 : i64, tpu.core_type = #tpu.core_type<tc>} {
    %c0 = arith.constant 0 : index
    %c0_0 = arith.constant 0 : index
    %c0_1 = arith.constant 0 : index
    %0 = vector.load %arg0[%c0, %c0_0, %c0_1] : memref<2x8x32xf32, #tpu.memory_space<vmem>>, vector<2x8x32xf32>
    %1 = vector.shape_cast %0 : vector<2x8x32xf32> to vector<16x32xf32>
    %2 = arith.truncf %1 : vector<16x32xf32> to vector<16x32xbf16>
    %c0_2 = arith.constant 0 : index
    %c0_3 = arith.constant 0 : index
    %3 = vector.load %arg1[%c0_2, %c0_3] : memref<32x384xbf16, #tpu.memory_space<vmem>>, vector<32x384xbf16>
    %cst = arith.constant dense<0.000000e+00> : vector<16x384xf32>
    %4 = tpu.matmul %2, %3, %cst {dimension_numbers = #tpu.dot_dimension_numbers<[1], [0], [0], [1], [0, 0, 1, 1], [], []>} : vector<16x32xbf16>, vector<32x384xbf16>, vector<16x384xf32> -> vector<16x384xf32>
    %5 = vector.extract_strided_slice %4 {offsets = [0, 0], sizes = [16, 128], strides = [1, 1]} : vector<16x384xf32> to vector<16x128xf32>
    %6 = vector.shape_cast %5 : vector<16x128xf32> to vector<2x8x128xf32>
    %7 = vector.extract_strided_slice %4 {offsets = [0, 128], sizes = [16, 128], strides = [1, 1]} : vector<16x384xf32> to vector<16x128xf32>
    %8 = vector.shape_cast %7 : vector<16x128xf32> to vector<2x8x128xf32>
    %9 = vector.extract_strided_slice %4 {offsets = [0, 256], sizes = [16, 128], strides = [1, 1]} : vector<16x384xf32> to vector<16x128xf32>
    %10 = vector.shape_cast %9 : vector<16x128xf32> to vector<2x8x128xf32>
    %11 = vector.extract_strided_slice %6 {offsets = [0, 0, 0], sizes = [2, 8, 32], strides = [1, 1, 1]} : vector<2x8x128xf32> to vector<2x8x32xf32>
    %12 = arith.truncf %11 : vector<2x8x32xf32> to vector<2x8x32xbf16>
    %13 = vector.extract_strided_slice %8 {offsets = [0, 0, 0], sizes = [2, 8, 32], strides = [1, 1, 1]} : vector<2x8x128xf32> to vector<2x8x32xf32>
    %14 = arith.truncf %13 : vector<2x8x32xf32> to vector<2x8x32xbf16>
    %15 = vector.extract_strided_slice %10 {offsets = [0, 0, 0], sizes = [2, 8, 32], strides = [1, 1, 1]} : vector<2x8x128xf32> to vector<2x8x32xf32>
    %16 = arith.truncf %15 : vector<2x8x32xf32> to vector<2x8x32xbf16>
    "tpu.trace_start"() <{level = 10 : i32, message = "bld,bmd->blm"}> : () -> ()
    %cst_4 = arith.constant dense<0.000000e+00> : vector<2x8x8xf32>
    %17 = tpu.matmul %12, %14, %cst_4 {dimension_numbers = #tpu.dot_dimension_numbers<[2], [2], [1], [1], [0, 0, 0, 1, 1, 1], [0], [0]>} : vector<2x8x32xbf16>, vector<2x8x32xbf16>, vector<2x8x8xf32> -> vector<2x8x8xf32>
    "tpu.trace_stop"() : () -> ()
    %cst_5 = arith.constant dense<0xFF800000> : vector<2x8xf32>
    %18 = vector.multi_reduction <maximumf>, %17, %cst_5 [2] : vector<2x8x8xf32> to vector<2x8xf32>
    %19 = vector.shape_cast %18 : vector<2x8xf32> to vector<2x8x1xf32>
    %20 = vector.broadcast %19 : vector<2x8x1xf32> to vector<2x8x8xf32>
    %21 = arith.subf %17, %20 : vector<2x8x8xf32>
    %22 = math.exp %21 : vector<2x8x8xf32>
    %cst_6 = arith.constant dense<0.000000e+00> : vector<2x8xf32>
    %23 = vector.multi_reduction <add>, %22, %cst_6 [2] : vector<2x8x8xf32> to vector<2x8xf32>
    %24 = vector.shape_cast %23 : vector<2x8xf32> to vector<2x8x1xf32>
    %25 = arith.truncf %22 : vector<2x8x8xf32> to vector<2x8x8xbf16>
    "tpu.trace_start"() <{level = 10 : i32, message = "blm,bmd->bld"}> : () -> ()
    %cst_7 = arith.constant dense<0.000000e+00> : vector<2x8x32xf32>
    %26 = tpu.matmul %25, %16, %cst_7 {dimension_numbers = #tpu.dot_dimension_numbers<[2], [1], [1], [2], [0, 0, 0, 1, 1, 2], [0], [0]>} : vector<2x8x8xbf16>, vector<2x8x32xbf16>, vector<2x8x32xf32> -> vector<2x8x32xf32>
    "tpu.trace_stop"() : () -> ()
    %27 = tpu.reciprocal %24 {approx = true} : vector<2x8x1xf32> -> vector<2x8x1xf32>
    %28 = vector.broadcast %27 : vector<2x8x1xf32> to vector<2x8x32xf32>
    %29 = arith.mulf %26, %28 : vector<2x8x32xf32>
    %30 = vector.shape_cast %29 : vector<2x8x32xf32> to vector<16x32xf32>
    %31 = arith.truncf %30 : vector<16x32xf32> to vector<16x32xbf16>
    %c0_8 = arith.constant 0 : index
    %c0_9 = arith.constant 0 : index
    %32 = vector.load %arg5[%c0_8, %c0_9] : memref<16x128xbf16, #tpu.memory_space<vmem>>, vector<16x32xbf16>
    tpu.vector_store %arg5[%c0_8, %c0_9], %31 {strides = array<i32>} : memref<16x128xbf16, #tpu.memory_space<vmem>>, vector<16x32xbf16>,
    %33 = vector.extract_strided_slice %6 {offsets = [0, 0, 32], sizes = [2, 8, 32], strides = [1, 1, 1]} : vector<2x8x128xf32> to vector<2x8x32xf32>
    %34 = arith.truncf %33 : vector<2x8x32xf32> to vector<2x8x32xbf16>
    %35 = vector.extract_strided_slice %8 {offsets = [0, 0, 32], sizes = [2, 8, 32], strides = [1, 1, 1]} : vector<2x8x128xf32> to vector<2x8x32xf32>
    %36 = arith.truncf %35 : vector<2x8x32xf32> to vector<2x8x32xbf16>
    %37 = vector.extract_strided_slice %10 {offsets = [0, 0, 32], sizes = [2, 8, 32], strides = [1, 1, 1]} : vector<2x8x128xf32> to vector<2x8x32xf32>
    %38 = arith.truncf %37 : vector<2x8x32xf32> to vector<2x8x32xbf16>
    "tpu.trace_start"() <{level = 10 : i32, message = "bld,bmd->blm"}> : () -> ()
    %cst_10 = arith.constant dense<0.000000e+00> : vector<2x8x8xf32>
    %39 = tpu.matmul %34, %36, %cst_10 {dimension_numbers = #tpu.dot_dimension_numbers<[2], [2], [1], [1], [0, 0, 0, 1, 1, 1], [0], [0]>} : vector<2x8x32xbf16>, vector<2x8x32xbf16>, vector<2x8x8xf32> -> vector<2x8x8xf32>
    "tpu.trace_stop"() : () -> ()
    %cst_11 = arith.constant dense<0xFF800000> : vector<2x8xf32>
    %40 = vector.multi_reduction <maximumf>, %39, %cst_11 [2] : vector<2x8x8xf32> to vector<2x8xf32>
    %41 = vector.shape_cast %40 : vector<2x8xf32> to vector<2x8x1xf32>
    %42 = vector.broadcast %41 : vector<2x8x1xf32> to vector<2x8x8xf32>
    %43 = arith.subf %39, %42 : vector<2x8x8xf32>
    %44 = math.exp %43 : vector<2x8x8xf32>
    %cst_12 = arith.constant dense<0.000000e+00> : vector<2x8xf32>
    %45 = vector.multi_reduction <add>, %44, %cst_12 [2] : vector<2x8x8xf32> to vector<2x8xf32>
    %46 = vector.shape_cast %45 : vector<2x8xf32> to vector<2x8x1xf32>
    %47 = arith.truncf %44 : vector<2x8x8xf32> to vector<2x8x8xbf16>
    "tpu.trace_start"() <{level = 10 : i32, message = "blm,bmd->bld"}> : () -> ()
    %cst_13 = arith.constant dense<0.000000e+00> : vector<2x8x32xf32>
    %48 = tpu.matmul %47, %38, %cst_13 {dimension_numbers = #tpu.dot_dimension_numbers<[2], [1], [1], [2], [0, 0, 0, 1, 1, 2], [0], [0]>} : vector<2x8x8xbf16>, vector<2x8x32xbf16>, vector<2x8x32xf32> -> vector<2x8x32xf32>
    "tpu.trace_stop"() : () -> ()
    %49 = tpu.reciprocal %46 {approx = true} : vector<2x8x1xf32> -> vector<2x8x1xf32>
    %50 = vector.broadcast %49 : vector<2x8x1xf32> to vector<2x8x32xf32>
    %51 = arith.mulf %48, %50 : vector<2x8x32xf32>
    %52 = vector.shape_cast %51 : vector<2x8x32xf32> to vector<16x32xf32>
    %53 = arith.truncf %52 : vector<16x32xf32> to vector<16x32xbf16>
    %c0_14 = arith.constant 0 : index
    %c32 = arith.constant 32 : index
    %54 = vector.load %arg5[%c0_14, %c32] : memref<16x128xbf16, #tpu.memory_space<vmem>>, vector<16x32xbf16>
    tpu.vector_store %arg5[%c0_14, %c32], %53 {strides = array<i32>} : memref<16x128xbf16, #tpu.memory_space<vmem>>, vector<16x32xbf16>,
    %55 = vector.extract_strided_slice %6 {offsets = [0, 0, 64], sizes = [2, 8, 32], strides = [1, 1, 1]} : vector<2x8x128xf32> to vector<2x8x32xf32>
    %56 = arith.truncf %55 : vector<2x8x32xf32> to vector<2x8x32xbf16>
    %57 = vector.extract_strided_slice %8 {offsets = [0, 0, 64], sizes = [2, 8, 32], strides = [1, 1, 1]} : vector<2x8x128xf32> to vector<2x8x32xf32>
    %58 = arith.truncf %57 : vector<2x8x32xf32> to vector<2x8x32xbf16>
    %59 = vector.extract_strided_slice %10 {offsets = [0, 0, 64], sizes = [2, 8, 32], strides = [1, 1, 1]} : vector<2x8x128xf32> to vector<2x8x32xf32>
    %60 = arith.truncf %59 : vector<2x8x32xf32> to vector<2x8x32xbf16>
    "tpu.trace_start"() <{level = 10 : i32, message = "bld,bmd->blm"}> : () -> ()
    %cst_15 = arith.constant dense<0.000000e+00> : vector<2x8x8xf32>
    %61 = tpu.matmul %56, %58, %cst_15 {dimension_numbers = #tpu.dot_dimension_numbers<[2], [2], [1], [1], [0, 0, 0, 1, 1, 1], [0], [0]>} : vector<2x8x32xbf16>, vector<2x8x32xbf16>, vector<2x8x8xf32> -> vector<2x8x8xf32>
    "tpu.trace_stop"() : () -> ()
    %cst_16 = arith.constant dense<0xFF800000> : vector<2x8xf32>
    %62 = vector.multi_reduction <maximumf>, %61, %cst_16 [2] : vector<2x8x8xf32> to vector<2x8xf32>
    %63 = vector.shape_cast %62 : vector<2x8xf32> to vector<2x8x1xf32>
    %64 = vector.broadcast %63 : vector<2x8x1xf32> to vector<2x8x8xf32>
    %65 = arith.subf %61, %64 : vector<2x8x8xf32>
    %66 = math.exp %65 : vector<2x8x8xf32>
    %cst_17 = arith.constant dense<0.000000e+00> : vector<2x8xf32>
    %67 = vector.multi_reduction <add>, %66, %cst_17 [2] : vector<2x8x8xf32> to vector<2x8xf32>
    %68 = vector.shape_cast %67 : vector<2x8xf32> to vector<2x8x1xf32>
    %69 = arith.truncf %66 : vector<2x8x8xf32> to vector<2x8x8xbf16>
    "tpu.trace_start"() <{level = 10 : i32, message = "blm,bmd->bld"}> : () -> ()
    %cst_18 = arith.constant dense<0.000000e+00> : vector<2x8x32xf32>
    %70 = tpu.matmul %69, %60, %cst_18 {dimension_numbers = #tpu.dot_dimension_numbers<[2], [1], [1], [2], [0, 0, 0, 1, 1, 2], [0], [0]>} : vector<2x8x8xbf16>, vector<2x8x32xbf16>, vector<2x8x32xf32> -> vector<2x8x32xf32>
    "tpu.trace_stop"() : () -> ()
    %71 = tpu.reciprocal %68 {approx = true} : vector<2x8x1xf32> -> vector<2x8x1xf32>
    %72 = vector.broadcast %71 : vector<2x8x1xf32> to vector<2x8x32xf32>
    %73 = arith.mulf %70, %72 : vector<2x8x32xf32>
    %74 = vector.shape_cast %73 : vector<2x8x32xf32> to vector<16x32xf32>
    %75 = arith.truncf %74 : vector<16x32xf32> to vector<16x32xbf16>
    %c0_19 = arith.constant 0 : index
    %c64 = arith.constant 64 : index
    %76 = vector.load %arg5[%c0_19, %c64] : memref<16x128xbf16, #tpu.memory_space<vmem>>, vector<16x32xbf16>
    tpu.vector_store %arg5[%c0_19, %c64], %75 {strides = array<i32>} : memref<16x128xbf16, #tpu.memory_space<vmem>>, vector<16x32xbf16>,
    %77 = vector.extract_strided_slice %6 {offsets = [0, 0, 96], sizes = [2, 8, 32], strides = [1, 1, 1]} : vector<2x8x128xf32> to vector<2x8x32xf32>
    %78 = arith.truncf %77 : vector<2x8x32xf32> to vector<2x8x32xbf16>
    %79 = vector.extract_strided_slice %8 {offsets = [0, 0, 96], sizes = [2, 8, 32], strides = [1, 1, 1]} : vector<2x8x128xf32> to vector<2x8x32xf32>
    %80 = arith.truncf %79 : vector<2x8x32xf32> to vector<2x8x32xbf16>
    %81 = vector.extract_strided_slice %10 {offsets = [0, 0, 96], sizes = [2, 8, 32], strides = [1, 1, 1]} : vector<2x8x128xf32> to vector<2x8x32xf32>
    %82 = arith.truncf %81 : vector<2x8x32xf32> to vector<2x8x32xbf16>
    "tpu.trace_start"() <{level = 10 : i32, message = "bld,bmd->blm"}> : () -> ()
    %cst_20 = arith.constant dense<0.000000e+00> : vector<2x8x8xf32>
    %83 = tpu.matmul %78, %80, %cst_20 {dimension_numbers = #tpu.dot_dimension_numbers<[2], [2], [1], [1], [0, 0, 0, 1, 1, 1], [0], [0]>} : vector<2x8x32xbf16>, vector<2x8x32xbf16>, vector<2x8x8xf32> -> vector<2x8x8xf32>
    "tpu.trace_stop"() : () -> ()
    %cst_21 = arith.constant dense<0xFF800000> : vector<2x8xf32>
    %84 = vector.multi_reduction <maximumf>, %83, %cst_21 [2] : vector<2x8x8xf32> to vector<2x8xf32>
    %85 = vector.shape_cast %84 : vector<2x8xf32> to vector<2x8x1xf32>
    %86 = vector.broadcast %85 : vector<2x8x1xf32> to vector<2x8x8xf32>
    %87 = arith.subf %83, %86 : vector<2x8x8xf32>
    %88 = math.exp %87 : vector<2x8x8xf32>
    %cst_22 = arith.constant dense<0.000000e+00> : vector<2x8xf32>
    %89 = vector.multi_reduction <add>, %88, %cst_22 [2] : vector<2x8x8xf32> to vector<2x8xf32>
    %90 = vector.shape_cast %89 : vector<2x8xf32> to vector<2x8x1xf32>
    %91 = arith.truncf %88 : vector<2x8x8xf32> to vector<2x8x8xbf16>
    "tpu.trace_start"() <{level = 10 : i32, message = "blm,bmd->bld"}> : () -> ()
    %cst_23 = arith.constant dense<0.000000e+00> : vector<2x8x32xf32>
    %92 = tpu.matmul %91, %82, %cst_23 {dimension_numbers = #tpu.dot_dimension_numbers<[2], [1], [1], [2], [0, 0, 0, 1, 1, 2], [0], [0]>} : vector<2x8x8xbf16>, vector<2x8x32xbf16>, vector<2x8x32xf32> -> vector<2x8x32xf32>
    "tpu.trace_stop"() : () -> ()
    %93 = tpu.reciprocal %90 {approx = true} : vector<2x8x1xf32> -> vector<2x8x1xf32>
    %94 = vector.broadcast %93 : vector<2x8x1xf32> to vector<2x8x32xf32>
    %95 = arith.mulf %92, %94 : vector<2x8x32xf32>
    %96 = vector.shape_cast %95 : vector<2x8x32xf32> to vector<16x32xf32>
    %97 = arith.truncf %96 : vector<16x32xf32> to vector<16x32xbf16>
    %c0_24 = arith.constant 0 : index
    %c96 = arith.constant 96 : index
    %98 = vector.load %arg5[%c0_24, %c96] : memref<16x128xbf16, #tpu.memory_space<vmem>>, vector<16x32xbf16>
    tpu.vector_store %arg5[%c0_24, %c96], %97 {strides = array<i32>} : memref<16x128xbf16, #tpu.memory_space<vmem>>, vector<16x32xbf16>,
    %c0_25 = arith.constant 0 : index
    %c0_26 = arith.constant 0 : index
    %99 = vector.load %arg5[%c0_25, %c0_26] : memref<16x128xbf16, #tpu.memory_space<vmem>>, vector<16x128xbf16>
    %c0_27 = arith.constant 0 : index
    %c0_28 = arith.constant 0 : index
    %100 = vector.load %arg2[%c0_27, %c0_28] : memref<128x32xbf16, #tpu.memory_space<vmem>>, vector<128x32xbf16>
    %cst_29 = arith.constant dense<0.000000e+00> : vector<16x32xf32>
    %101 = tpu.matmul %99, %100, %cst_29 {dimension_numbers = #tpu.dot_dimension_numbers<[1], [0], [0], [1], [0, 0, 1, 1], [], []>} : vector<16x128xbf16>, vector<128x32xbf16>, vector<16x32xf32> -> vector<16x32xf32>
    %c0_30 = arith.constant 0 : index
    %c0_31 = arith.constant 0 : index
    %102 = vector.load %arg3[%c0_30, %c0_31] : memref<1x32xf32, #tpu.memory_space<vmem>>, vector<1x32xf32>
    %103 = vector.broadcast %102 : vector<1x32xf32> to vector<16x32xf32>
    %104 = arith.addf %101, %103 : vector<16x32xf32>
    %105 = vector.shape_cast %104 : vector<16x32xf32> to vector<2x8x32xf32>
    %c0_32 = arith.constant 0 : index
    %c0_33 = arith.constant 0 : index
    %c0_34 = arith.constant 0 : index
    %106 = vector.load %arg4[%c0_32, %c0_33, %c0_34] : memref<2x8x32xf32, #tpu.memory_space<vmem>>, vector<2x8x32xf32>
    tpu.vector_store %arg4[%c0_32, %c0_33, %c0_34], %105 {strides = array<i32>} : memref<2x8x32xf32, #tpu.memory_space<vmem>>, vector<2x8x32xf32>,
    return
  }
}

</mosaic_0001>

<llo_original>
// kernel: self_attention_pallas.1
$region0: #{self_attention_pallas.1}
  #allocation0 [shape = 'u32[]', space=smem, size = 0x4, offset = 0x4, fixed_abs, tag = 'smem constant byte address 0x4 - core index']
  #allocation1 [shape = 'u32[144,128]{1,0:T(1,128)}', space=vmem, size = 0x12000, scoped, tag = 'internal scratch']
  #allocation2 [shape = 'bf16[16,128]{1,0:T(16,128)(2,1)}', space=vmem, size = 0x1000, scoped, tag = 'scratch operand']
  %s0 = inlined_call_operand.vmem [shape: f32[2,8,32], index: 0, kind: input, shape index: {}]
  %s1 = inlined_call_operand.vmem [shape: bf16[32,384], index: 1, kind: input, shape index: {}]
  %s2 = inlined_call_operand.vmem [shape: bf16[128,32], index: 2, kind: input, shape index: {}]
  %s3 = inlined_call_operand.vmem [shape: f32[1,32], index: 3, kind: input, shape index: {}]
  %s4 = inlined_call_operand.hbm [shape: f32[2,8,32], index: 4, kind: output, shape index: {}]
  %s5 = sld [smem:[#allocation0]]
  $region26: #{self_attention_pallas.1} parent=0
    _
  %s7 = ssub.s32 1, %s5
  %s8 = scalar_select 0, %s7, %s5
  $region1: #{self_attention_pallas.1} parent=0
    #allocation3 [shape = 'u8[8192]{0}', space=vmem, size = 0x2000, scoped, tag = 'output window, operand 0, single buffered']
    #allocation4 [shape = 's32[1]{0}', space=sflag, size = 0x4, scoped, tag = 'scoped memory for self_attention_pallas.1']
    %9 = vsyncpa [#allocation4], 0
    // Predicated region
    $region2: #{self_attention_pallas.1} parent=1 // pred_check
      _
    $region3: #{self_attention_pallas.1} parent=1 // pred_check_branch
      %11 = sbr.rel (0) target = $region5
    $region4: #{self_attention_pallas.1} parent=1 // pred_region
      _
    $region5: #{self_attention_pallas.1} parent=1 // pred_fallthru
      _
    // Predicated region
    $region6: #{self_attention_pallas.1} parent=1 // pred_check
      _
    $region7: #{self_attention_pallas.1} parent=1 // pred_check_branch
      %13 = sbr.rel (0) target = $region9
    $region8: #{self_attention_pallas.1} parent=1 // pred_region
      _
    $region9: #{self_attention_pallas.1} parent=1 // pred_fallthru
      _
    // Predicated region
    $region10: #{self_attention_pallas.1} parent=1 // pred_check
      _
    $region11: #{self_attention_pallas.1} parent=1 // pred_check_branch
      %15 = sbr.rel (0) target = $region13
    $region12: #{self_attention_pallas.1} parent=1 // pred_region
      _
    $region13: #{self_attention_pallas.1} parent=1 // pred_fallthru
      _
    // Predicated region
    $region14: #{self_attention_pallas.1} parent=1 // pred_check
      _
    $region15: #{self_attention_pallas.1} parent=1 // pred_check_branch
      %17 = sbr.rel (0) target = $region17
    $region16: #{self_attention_pallas.1} parent=1 // pred_region
      _
    $region17: #{self_attention_pallas.1} parent=1 // pred_fallthru
      _
    %v19 = vld [vmem:[%s0] sm:$0xff]
    %v20 = vld [vmem:[%s0 + $0x8] sm:$0xff]
    %v21 = vpack.c.bf16 %v20, %v19
    %v22 = vld [vmem:[%s1] sm:$0xff]
    %v23 = vld [vmem:[%s1 + $0x8] sm:$0xf]
    %v24 = vld [vmem:[%s1 + $0xc] sm:$0xff]
    %v25 = vld [vmem:[%s1 + $0x14] sm:$0xf]
    %v26 = vld [vmem:[%s1 + $0x18] sm:$0xff]
    %v27 = vld [vmem:[%s1 + $0x20] sm:$0xf]
    %v28 = vld [vmem:[%s1 + $0x24] sm:$0xff]
    %v29 = vld [vmem:[%s1 + $0x2c] sm:$0xf]
    %v38 = vunpack.c.l.b16 %v22
    %v39 = vunpack.c.h.b16 %v22
    %v40 = vunpack.c.l.b16 %v23
    %v41 = vunpack.c.l.b16 %v24
    %v42 = vunpack.c.h.b16 %v24
    %v43 = vunpack.c.l.b16 %v25
    %v44 = vunpack.c.l.b16 %v26
    %v45 = vunpack.c.h.b16 %v26
    %v46 = vunpack.c.l.b16 %v27
    %v47 = vunpack.c.l.b16 %v28
    %v48 = vunpack.c.h.b16 %v28
    %v49 = vunpack.c.l.b16 %v29
    %v50 = vpack.c.b16 %v41, %v38
    %v51 = vpack.c.b16 %v42, %v39
    %v52 = vpack.c.b16 %v43, %v40
    %v53 = vpack.c.b16 %v47, %v44
    %v54 = vpack.c.b16 %v48, %v45
    %v55 = vpack.c.b16 %v49, %v46
    %vm62 = vcmask 261120
    %v64 = vsel %vm62, %v21, 0
    %66 = vmatprep.subr.bf16.mxu0 %v51
    %67 = vmatpush1.bf16.msra.mxu0 %v50
    %68 = vmatprep.subr.bf16.mxu0 %v54
    %69 = vmatpush1.bf16.msra.mxu0 %v53
    %70 = vmatprep.subr.bf16.mxu0 0
    %71 = vmatpush1.bf16.msra.mxu0 0
    %72 = vmatprep.subr.bf16.mxu0 0
    %73 = vmatpush1.bf16.msra.mxu0 0
    %74 = vmatprep.subr.bf16.mxu0 0
    %75 = vmatpush1.bf16.msra.mxu0 0
    %76 = vmatprep.subr.bf16.mxu0 0
    %77 = vmatpush1.bf16.msra.mxu0 0
    %78 = vmatprep.subr.bf16.mxu0 0
    %79 = vmatpush1.bf16.msra.mxu0 0
    %80 = vmatprep.subr.bf16.mxu0 0
    %81 = vmatpush1.bf16.msra.mxu0 0
    %82 = vmatprep.subr.bf16.mxu0 0
    %83 = vmatpush1.bf16.msra.mxu0 0
    %84 = vmatprep.subr.bf16.mxu0 0
    %85 = vmatpush1.bf16.msra.mxu0 0
    %86 = vmatprep.subr.bf16.mxu0 0
    %87 = vmatpush1.bf16.msra.mxu0 0
    %88 = vmatprep.subr.bf16.mxu0 0
    %89 = vmatpush1.bf16.msra.mxu0 0
    %90 = vmatprep.subr.bf16.mxu0 0
    %91 = vmatpush1.bf16.msra.mxu0 0
    %92 = vmatprep.subr.bf16.mxu0 0
    %93 = vmatpush1.bf16.msra.mxu0 0
    %94 = vmatprep.subr.bf16.mxu0 0
    %95 = vmatpush1.bf16.msra.mxu0 0
    %96 = vmatprep.subr.bf16.mxu0 0
    %97 = vmatpush1.bf16.msra.mxu0 0
    %98 = vmatprep.mubr.bf16.mxu0 0
    %99 = vmatmul.mubr.bf16.gmra.mrb[0].mxu0 %v64
    %v100 = vpop.f32.mrb[0].mxu0
    %v101 = vadd.f32 0.0, %v100
    %v102 = vpop.f32.mrb[0].mxu0
    %v103 = vadd.f32 0.0, %v102
    %v104 = vpop.f32.mrb[0].mxu0
    %v105 = vadd.f32 0.0, %v104
    %v106 = vpop.f32.mrb[0].mxu0
    %v107 = vadd.f32 0.0, %v106
    %108 = vdwg.mxu0
    %109 = vmatprep.subr.bf16.mxu0 0
    %110 = vmatpush1.bf16.msra.mxu0 %v52
    %111 = vmatprep.subr.bf16.mxu0 0
    %112 = vmatpush1.bf16.msra.mxu0 %v55
    %113 = vmatprep.subr.bf16.mxu0 0
    %114 = vmatpush1.bf16.msra.mxu0 0
    %115 = vmatprep.subr.bf16.mxu0 0
    %116 = vmatpush1.bf16.msra.mxu0 0
    %117 = vmatprep.subr.bf16.mxu0 0
    %118 = vmatpush1.bf16.msra.mxu0 0
    %119 = vmatprep.subr.bf16.mxu0 0
    %120 = vmatpush1.bf16.msra.mxu0 0
    %121 = vmatprep.subr.bf16.mxu0 0
    %122 = vmatpush1.bf16.msra.mxu0 0
    %123 = vmatprep.subr.bf16.mxu0 0
    %124 = vmatpush1.bf16.msra.mxu0 0
    %125 = vmatprep.subr.bf16.mxu0 0
    %126 = vmatpush1.bf16.msra.mxu0 0
    %127 = vmatprep.subr.bf16.mxu0 0
    %128 = vmatpush1.bf16.msra.mxu0 0
    %129 = vmatprep.subr.bf16.mxu0 0
    %130 = vmatpush1.bf16.msra.mxu0 0
    %131 = vmatprep.subr.bf16.mxu0 0
    %132 = vmatpush1.bf16.msra.mxu0 0
    %133 = vmatprep.subr.bf16.mxu0 0
    %134 = vmatpush1.bf16.msra.mxu0 0
    %135 = vmatprep.subr.bf16.mxu0 0
    %136 = vmatpush1.bf16.msra.mxu0 0
    %137 = vmatprep.subr.bf16.mxu0 0
    %138 = vmatpush1.bf16.msra.mxu0 0
    %139 = vmatprep.subr.bf16.mxu0 0
    %140 = vmatpush1.bf16.msra.mxu0 0
    %141 = vmatprep.mubr.bf16.mxu0 0
    %142 = vmatmul.mubr.bf16.gmra.mrb[0].mxu0 %v64
    %v143 = vpop.f32.mrb[0].mxu0
    %v144 = vadd.f32 0.0, %v143
    %v145 = vpop.f32.mrb[0].mxu0
    %v146 = vpop.f32.mrb[0].mxu0
    %v147 = vadd.f32 0.0, %v146
    %v148 = vpop.f32.mrb[0].mxu0
    %149 = vdwg.mxu0
    %v150 = vpack.c.bf16 %v101, %v101
    %v151 = vpack.c.bf16 %v105, %v105
    %v152 = vpack.c.bf16 %v103, %v103
    %v153 = vpack.c.bf16 %v107, %v107
    %v154 = vpack.c.bf16 %v144, %v144
    %v155 = vpack.c.bf16 %v147, %v147
    %v157 = vsel %vm62, %v150, 0
    %v160 = vsel %vm62, %v152, 0
    %162 = vmatprep.subr.bf16.mxu0 0
    %163 = vmatpush1.bf16.xpose.msra.mxu0 %v160
    %164 = vmatprep.subr.bf16.mxu0 0
    %165 = vmatpush1.bf16.xpose.msra.mxu0 0
    %166 = vmatprep.subr.bf16.mxu0 0
    %167 = vmatpush1.bf16.xpose.msra.mxu0 0
    %168 = vmatprep.subr.bf16.mxu0 0
    %169 = vmatpush1.bf16.xpose.msra.mxu0 0
    %170 = vmatprep.subr.bf16.mxu0 0
    %171 = vmatpush1.bf16.xpose.msra.mxu0 0
    %172 = vmatprep.subr.bf16.mxu0 0
    %173 = vmatpush1.bf16.xpose.msra.mxu0 0
    %174 = vmatprep.subr.bf16.mxu0 0
    %175 = vmatpush1.bf16.xpose.msra.mxu0 0
    %176 = vmatprep.subr.bf16.mxu0 0
    %177 = vmatpush1.bf16.xpose.msra.mxu0 0
    %178 = vmatprep.subr.bf16.mxu0 0
    %179 = vmatpush1.bf16.xpose.msra.mxu0 0
    %180 = vmatprep.subr.bf16.mxu0 0
    %181 = vmatpush1.bf16.xpose.msra.mxu0 0
    %182 = vmatprep.subr.bf16.mxu0 0
    %183 = vmatpush1.bf16.xpose.msra.mxu0 0
    %184 = vmatprep.subr.bf16.mxu0 0
    %185 = vmatpush1.bf16.xpose.msra.mxu0 0
    %186 = vmatprep.subr.bf16.mxu0 0
    %187 = vmatpush1.bf16.xpose.msra.mxu0 0
    %188 = vmatprep.subr.bf16.mxu0 0
    %189 = vmatpush1.bf16.xpose.msra.mxu0 0
    %190 = vmatprep.subr.bf16.mxu0 0
    %191 = vmatpush1.bf16.xpose.msra.mxu0 0
    %192 = vmatprep.subr.bf16.mxu0 0
    %193 = vmatpush1.bf16.xpose.msra.mxu0 0
    %194 = vmatprep.mubr.bf16.mxu0 0
    %195 = vmatmul.mubr.bf16.gmra.mrb[0].mxu0 %v157
    %v196 = vpop.f32.mrb[0].mxu0
    %v197 = vadd.f32 0.0, %v196
    %v198 = vpop.f32.mrb[0].mxu0
    %v199 = vpop.f32.mrb[0].mxu0
    %v200 = vpop.f32.mrb[0].mxu0
    %201 = vdwg.mxu0
    %v203 = vsel %vm62, %v151, 0
    %v206 = vsel %vm62, %v153, 0
    %208 = vmatprep.subr.bf16.mxu0 0
    %209 = vmatpush1.bf16.xpose.msra.mxu0 %v206
    %210 = vmatprep.subr.bf16.mxu0 0
    %211 = vmatpush1.bf16.xpose.msra.mxu0 0
    %212 = vmatprep.subr.bf16.mxu0 0
    %213 = vmatpush1.bf16.xpose.msra.mxu0 0
    %214 = vmatprep.subr.bf16.mxu0 0
    %215 = vmatpush1.bf16.xpose.msra.mxu0 0
    %216 = vmatprep.subr.bf16.mxu0 0
    %217 = vmatpush1.bf16.xpose.msra.mxu0 0
    %218 = vmatprep.subr.bf16.mxu0 0
    %219 = vmatpush1.bf16.xpose.msra.mxu0 0
    %220 = vmatprep.subr.bf16.mxu0 0
    %221 = vmatpush1.bf16.xpose.msra.mxu0 0
    %222 = vmatprep.subr.bf16.mxu0 0
    %223 = vmatpush1.bf16.xpose.msra.mxu0 0
    %224 = vmatprep.subr.bf16.mxu0 0
    %225 = vmatpush1.bf16.xpose.msra.mxu0 0
    %226 = vmatprep.subr.bf16.mxu0 0
    %227 = vmatpush1.bf16.xpose.msra.mxu0 0
    %228 = vmatprep.subr.bf16.mxu0 0
    %229 = vmatpush1.bf16.xpose.msra.mxu0 0
    %230 = vmatprep.subr.bf16.mxu0 0
    %231 = vmatpush1.bf16.xpose.msra.mxu0 0
    %232 = vmatprep.subr.bf16.mxu0 0
    %233 = vmatpush1.bf16.xpose.msra.mxu0 0
    %234 = vmatprep.subr.bf16.mxu0 0
    %235 = vmatpush1.bf16.xpose.msra.mxu0 0
    %236 = vmatprep.subr.bf16.mxu0 0
    %237 = vmatpush1.bf16.xpose.msra.mxu0 0
    %238 = vmatprep.subr.bf16.mxu0 0
    %239 = vmatpush1.bf16.xpose.msra.mxu0 0
    %240 = vmatprep.mubr.bf16.mxu0 0
    %241 = vmatmul.mubr.bf16.gmra.mrb[0].mxu0 %v203
    %v242 = vpop.f32.mrb[0].mxu0
    %v243 = vadd.f32 0.0, %v242
    %v244 = vpop.f32.mrb[0].mxu0
    %v245 = vpop.f32.mrb[0].mxu0
    %v246 = vpop.f32.mrb[0].mxu0
    %247 = vdwg.mxu0
    %vm248 = vcmask 64512
    %v249 = vsel %vm248, %v197, -inf
    %250 = vmax.xlane.f32.xlu0 %v249
    %v251 = vpop.xlane.xlu0 %250
    %v252 = vsel %vm248, %v243, -inf
    %253 = vmax.xlane.f32.xlu0 %v252
    %v254 = vpop.xlane.xlu0 %253
    %v255 = vsub.f32 %v197, %v251
    %v256 = vsub.f32 %v243, %v254
    %v257 = vmul.f32 %v255, 1.442695
    %v258 = vpow.pop %v257
    %v259 = vmul.f32 %v256, 1.442695
    %v260 = vpow.pop %v259
    %v261 = vsel %vm248, %v258, 0.0
    %262 = vadd.xlane.f32.xlu0 %v261
    %v263 = vpop.xlane.xlu0 %262
    %v264 = vsel %vm248, %v260, 0.0
    %265 = vadd.xlane.f32.xlu0 %v264
    %v266 = vpop.xlane.xlu0 %265
    %v267 = vpack.c.bf16 %v258, %v258
    %v268 = vpack.c.bf16 %v260, %v260
    %v270 = vsel %vm248, %v267, 0
    %vm272 = vcmask 1043456
    %v274 = vsel %vm272, %v154, 0
    %276 = vmatprep.subr.bf16.mxu0 0
    %277 = vmatpush1.bf16.msra.mxu0 %v274
    %278 = vmatprep.subr.bf16.mxu0 0
    %279 = vmatpush1.bf16.msra.mxu0 0
    %280 = vmatprep.subr.bf16.mxu0 0
    %281 = vmatpush1.bf16.msra.mxu0 0
    %282 = vmatprep.subr.bf16.mxu0 0
    %283 = vmatpush1.bf16.msra.mxu0 0
    %284 = vmatprep.subr.bf16.mxu0 0
    %285 = vmatpush1.bf16.msra.mxu0 0
    %286 = vmatprep.subr.bf16.mxu0 0
    %287 = vmatpush1.bf16.msra.mxu0 0
    %288 = vmatprep.subr.bf16.mxu0 0
    %289 = vmatpush1.bf16.msra.mxu0 0
    %290 = vmatprep.subr.bf16.mxu0 0
    %291 = vmatpush1.bf16.msra.mxu0 0
    %292 = vmatprep.subr.bf16.mxu0 0
    %293 = vmatpush1.bf16.msra.mxu0 0
    %294 = vmatprep.subr.bf16.mxu0 0
    %295 = vmatpush1.bf16.msra.mxu0 0
    %296 = vmatprep.subr.bf16.mxu0 0
    %297 = vmatpush1.bf16.msra.mxu0 0
    %298 = vmatprep.subr.bf16.mxu0 0
    %299 = vmatpush1.bf16.msra.mxu0 0
    %300 = vmatprep.subr.bf16.mxu0 0
    %301 = vmatpush1.bf16.msra.mxu0 0
    %302 = vmatprep.subr.bf16.mxu0 0
    %303 = vmatpush1.bf16.msra.mxu0 0
    %304 = vmatprep.subr.bf16.mxu0 0
    %305 = vmatpush1.bf16.msra.mxu0 0
    %306 = vmatprep.subr.bf16.mxu0 0
    %307 = vmatpush1.bf16.msra.mxu0 0
    %308 = vmatprep.mubr.bf16.mxu0 0
    %309 = vmatmul.mubr.bf16.gmra.mrb[0].mxu0 %v270
    %v310 = vpop.f32.mrb[0].mxu0
    %v311 = vadd.f32 0.0, %v310
    %v312 = vpop.f32.mrb[0].mxu0
    %v313 = vpop.f32.mrb[0].mxu0
    %v314 = vpop.f32.mrb[0].mxu0
    %315 = vdwg.mxu0
    %v317 = vsel %vm248, %v268, 0
    %v320 = vsel %vm272, %v155, 0
    %322 = vmatprep.subr.bf16.mxu0 0
    %323 = vmatpush1.bf16.msra.mxu0 %v320
    %324 = vmatprep.subr.bf16.mxu0 0
    %325 = vmatpush1.bf16.msra.mxu0 0
    %326 = vmatprep.subr.bf16.mxu0 0
    %327 = vmatpush1.bf16.msra.mxu0 0
    %328 = vmatprep.subr.bf16.mxu0 0
    %329 = vmatpush1.bf16.msra.mxu0 0
    %330 = vmatprep.subr.bf16.mxu0 0
    %331 = vmatpush1.bf16.msra.mxu0 0
    %332 = vmatprep.subr.bf16.mxu0 0
    %333 = vmatpush1.bf16.msra.mxu0 0
    %334 = vmatprep.subr.bf16.mxu0 0
    %335 = vmatpush1.bf16.msra.mxu0 0
    %336 = vmatprep.subr.bf16.mxu0 0
    %337 = vmatpush1.bf16.msra.mxu0 0
    %338 = vmatprep.subr.bf16.mxu0 0
    %339 = vmatpush1.bf16.msra.mxu0 0
    %340 = vmatprep.subr.bf16.mxu0 0
    %341 = vmatpush1.bf16.msra.mxu0 0
    %342 = vmatprep.subr.bf16.mxu0 0
    %343 = vmatpush1.bf16.msra.mxu0 0
    %344 = vmatprep.subr.bf16.mxu0 0
    %345 = vmatpush1.bf16.msra.mxu0 0
    %346 = vmatprep.subr.bf16.mxu0 0
    %347 = vmatpush1.bf16.msra.mxu0 0
    %348 = vmatprep.subr.bf16.mxu0 0
    %349 = vmatpush1.bf16.msra.mxu0 0
    %350 = vmatprep.subr.bf16.mxu0 0
    %351 = vmatpush1.bf16.msra.mxu0 0
    %352 = vmatprep.subr.bf16.mxu0 0
    %353 = vmatpush1.bf16.msra.mxu0 0
    %354 = vmatprep.mubr.bf16.mxu0 0
    %355 = vmatmul.mubr.bf16.gmra.mrb[0].mxu0 %v317
    %v356 = vpop.f32.mrb[0].mxu0
    %v357 = vadd.f32 0.0, %v356
    %v358 = vpop.f32.mrb[0].mxu0
    %v359 = vpop.f32.mrb[0].mxu0
    %v360 = vpop.f32.mrb[0].mxu0
    %361 = vdwg.mxu0
    %v362 = vrcp.pop %v263
    %v363 = vrcp.pop %v266
    %v364 = vmul.f32 %v311, %v362
    %v365 = vmul.f32 %v357, %v363
    %v366 = vpack.c.bf16 %v365, %v364
    %367 = vst.msk [vmem:[#allocation2] sm:$0xff] %vm62, %v366
    %369 = vrot.lane.b32.xlu0 %v150, 96
    %v370 = vpop.permute.xlu0 %369
    %372 = vrot.lane.b32.xlu0 %v152, 96
    %v373 = vpop.permute.xlu0 %372
    %v375 = vsel %vm62, %v370, 0
    %v378 = vsel %vm62, %v373, 0
    %380 = vmatprep.subr.bf16.mxu0 0
    %381 = vmatpush1.bf16.xpose.msra.mxu0 %v378
    %382 = vmatprep.subr.bf16.mxu0 0
    %383 = vmatpush1.bf16.xpose.msra.mxu0 0
    %384 = vmatprep.subr.bf16.mxu0 0
    %385 = vmatpush1.bf16.xpose.msra.mxu0 0
    %386 = vmatprep.subr.bf16.mxu0 0
    %387 = vmatpush1.bf16.xpose.msra.mxu0 0
    %388 = vmatprep.subr.bf16.mxu0 0
    %389 = vmatpush1.bf16.xpose.msra.mxu0 0
    %390 = vmatprep.subr.bf16.mxu0 0
    %391 = vmatpush1.bf16.xpose.msra.mxu0 0
    %392 = vmatprep.subr.bf16.mxu0 0
    %393 = vmatpush1.bf16.xpose.msra.mxu0 0
    %394 = vmatprep.subr.bf16.mxu0 0
    %395 = vmatpush1.bf16.xpose.msra.mxu0 0
    %396 = vmatprep.subr.bf16.mxu0 0
    %397 = vmatpush1.bf16.xpose.msra.mxu0 0
    %398 = vmatprep.subr.bf16.mxu0 0
    %399 = vmatpush1.bf16.xpose.msra.mxu0 0
    %400 = vmatprep.subr.bf16.mxu0 0
    %401 = vmatpush1.bf16.xpose.msra.mxu0 0
    %402 = vmatprep.subr.bf16.mxu0 0
    %403 = vmatpush1.bf16.xpose.msra.mxu0 0
    %404 = vmatprep.subr.bf16.mxu0 0
    %405 = vmatpush1.bf16.xpose.msra.mxu0 0
    %406 = vmatprep.subr.bf16.mxu0 0
    %407 = vmatpush1.bf16.xpose.msra.mxu0 0
    %408 = vmatprep.subr.bf16.mxu0 0
    %409 = vmatpush1.bf16.xpose.msra.mxu0 0
    %410 = vmatprep.subr.bf16.mxu0 0
    %411 = vmatpush1.bf16.xpose.msra.mxu0 0
    %412 = vmatprep.mubr.bf16.mxu0 0
    %413 = vmatmul.mubr.bf16.gmra.mrb[0].mxu0 %v375
    %v414 = vpop.f32.mrb[0].mxu0
    %v415 = vadd.f32 0.0, %v414
    %v416 = vpop.f32.mrb[0].mxu0
    %v417 = vpop.f32.mrb[0].mxu0
    %v418 = vpop.f32.mrb[0].mxu0
    %419 = vdwg.mxu0
    %421 = vrot.lane.b32.xlu0 %v151, 96
    %v422 = vpop.permute.xlu0 %421
    %424 = vrot.lane.b32.xlu0 %v153, 96
    %v425 = vpop.permute.xlu0 %424
    %v427 = vsel %vm62, %v422, 0
    %v430 = vsel %vm62, %v425, 0
    %432 = vmatprep.subr.bf16.mxu0 0
    %433 = vmatpush1.bf16.xpose.msra.mxu0 %v430
    %434 = vmatprep.subr.bf16.mxu0 0
    %435 = vmatpush1.bf16.xpose.msra.mxu0 0
    %436 = vmatprep.subr.bf16.mxu0 0
    %437 = vmatpush1.bf16.xpose.msra.mxu0 0
    %438 = vmatprep.subr.bf16.mxu0 0
    %439 = vmatpush1.bf16.xpose.msra.mxu0 0
    %440 = vmatprep.subr.bf16.mxu0 0
    %441 = vmatpush1.bf16.xpose.msra.mxu0 0
    %442 = vmatprep.subr.bf16.mxu0 0
    %443 = vmatpush1.bf16.xpose.msra.mxu0 0
    %444 = vmatprep.subr.bf16.mxu0 0
    %445 = vmatpush1.bf16.xpose.msra.mxu0 0
    %446 = vmatprep.subr.bf16.mxu0 0
    %447 = vmatpush1.bf16.xpose.msra.mxu0 0
    %448 = vmatprep.subr.bf16.mxu0 0
    %449 = vmatpush1.bf16.xpose.msra.mxu0 0
    %450 = vmatprep.subr.bf16.mxu0 0
    %451 = vmatpush1.bf16.xpose.msra.mxu0 0
    %452 = vmatprep.subr.bf16.mxu0 0
    %453 = vmatpush1.bf16.xpose.msra.mxu0 0
    %454 = vmatprep.subr.bf16.mxu0 0
    %455 = vmatpush1.bf16.xpose.msra.mxu0 0
    %456 = vmatprep.subr.bf16.mxu0 0
    %457 = vmatpush1.bf16.xpose.msra.mxu0 0
    %458 = vmatprep.subr.bf16.mxu0 0
    %459 = vmatpush1.bf16.xpose.msra.mxu0 0
    %460 = vmatprep.subr.bf16.mxu0 0
    %461 = vmatpush1.bf16.xpose.msra.mxu0 0
    %462 = vmatprep.subr.bf16.mxu0 0
    %463 = vmatpush1.bf16.xpose.msra.mxu0 0
    %464 = vmatprep.mubr.bf16.mxu0 0
    %465 = vmatmul.mubr.bf16.gmra.mrb[0].mxu0 %v427
    %v466 = vpop.f32.mrb[0].mxu0
    %v467 = vadd.f32 0.0, %v466
    %v468 = vpop.f32.mrb[0].mxu0
    %v469 = vpop.f32.mrb[0].mxu0
    %v470 = vpop.f32.mrb[0].mxu0
    %471 = vdwg.mxu0
    %v472 = vsel %vm248, %v415, -inf
    %473 = vmax.xlane.f32.xlu0 %v472
    %v474 = vpop.xlane.xlu0 %473
    %v475 = vsel %vm248, %v467, -inf
    %476 = vmax.xlane.f32.xlu0 %v475
    %v477 = vpop.xlane.xlu0 %476
    %v478 = vsub.f32 %v415, %v474
    %v479 = vsub.f32 %v467, %v477
    %v480 = vmul.f32 %v478, 1.442695
    %v481 = vpow.pop %v480
    %v482 = vmul.f32 %v479, 1.442695
    %v483 = vpow.pop %v482
    %v484 = vsel %vm248, %v481, 0.0
    %485 = vadd.xlane.f32.xlu0 %v484
    %v486 = vpop.xlane.xlu0 %485
    %v487 = vsel %vm248, %v483, 0.0
    %488 = vadd.xlane.f32.xlu0 %v487
    %v489 = vpop.xlane.xlu0 %488
    %v490 = vpack.c.bf16 %v481, %v481
    %v491 = vpack.c.bf16 %v483, %v483
    %493 = vrot.lane.b32.xlu0 %v154, 96
    %v494 = vpop.permute.xlu0 %493
    %v496 = vsel %vm248, %v490, 0
    %v499 = vsel %vm272, %v494, 0
    %501 = vmatprep.subr.bf16.mxu0 0
    %502 = vmatpush1.bf16.msra.mxu0 %v499
    %503 = vmatprep.subr.bf16.mxu0 0
    %504 = vmatpush1.bf16.msra.mxu0 0
    %505 = vmatprep.subr.bf16.mxu0 0
    %506 = vmatpush1.bf16.msra.mxu0 0
    %507 = vmatprep.subr.bf16.mxu0 0
    %508 = vmatpush1.bf16.msra.mxu0 0
    %509 = vmatprep.subr.bf16.mxu0 0
    %510 = vmatpush1.bf16.msra.mxu0 0
    %511 = vmatprep.subr.bf16.mxu0 0
    %512 = vmatpush1.bf16.msra.mxu0 0
    %513 = vmatprep.subr.bf16.mxu0 0
    %514 = vmatpush1.bf16.msra.mxu0 0
    %515 = vmatprep.subr.bf16.mxu0 0
    %516 = vmatpush1.bf16.msra.mxu0 0
    %517 = vmatprep.subr.bf16.mxu0 0
    %518 = vmatpush1.bf16.msra.mxu0 0
    %519 = vmatprep.subr.bf16.mxu0 0
    %520 = vmatpush1.bf16.msra.mxu0 0
    %521 = vmatprep.subr.bf16.mxu0 0
    %522 = vmatpush1.bf16.msra.mxu0 0
    %523 = vmatprep.subr.bf16.mxu0 0
    %524 = vmatpush1.bf16.msra.mxu0 0
    %525 = vmatprep.subr.bf16.mxu0 0
    %526 = vmatpush1.bf16.msra.mxu0 0
    %527 = vmatprep.subr.bf16.mxu0 0
    %528 = vmatpush1.bf16.msra.mxu0 0
    %529 = vmatprep.subr.bf16.mxu0 0
    %530 = vmatpush1.bf16.msra.mxu0 0
    %531 = vmatprep.subr.bf16.mxu0 0
    %532 = vmatpush1.bf16.msra.mxu0 0
    %533 = vmatprep.mubr.bf16.mxu0 0
    %534 = vmatmul.mubr.bf16.gmra.mrb[0].mxu0 %v496
    %v535 = vpop.f32.mrb[0].mxu0
    %v536 = vadd.f32 0.0, %v535
    %v537 = vpop.f32.mrb[0].mxu0
    %v538 = vpop.f32.mrb[0].mxu0
    %v539 = vpop.f32.mrb[0].mxu0
    %540 = vdwg.mxu0
    %542 = vrot.lane.b32.xlu0 %v155, 96
    %v543 = vpop.permute.xlu0 %542
    %v545 = vsel %vm248, %v491, 0
    %v548 = vsel %vm272, %v543, 0
    %550 = vmatprep.subr.bf16.mxu0 0
    %551 = vmatpush1.bf16.msra.mxu0 %v548
    %552 = vmatprep.subr.bf16.mxu0 0
    %553 = vmatpush1.bf16.msra.mxu0 0
    %554 = vmatprep.subr.bf16.mxu0 0
    %555 = vmatpush1.bf16.msra.mxu0 0
    %556 = vmatprep.subr.bf16.mxu0 0
    %557 = vmatpush1.bf16.msra.mxu0 0
    %558 = vmatprep.subr.bf16.mxu0 0
    %559 = vmatpush1.bf16.msra.mxu0 0
    %560 = vmatprep.subr.bf16.mxu0 0
    %561 = vmatpush1.bf16.msra.mxu0 0
    %562 = vmatprep.subr.bf16.mxu0 0
    %563 = vmatpush1.bf16.msra.mxu0 0
    %564 = vmatprep.subr.bf16.mxu0 0
    %565 = vmatpush1.bf16.msra.mxu0 0
    %566 = vmatprep.subr.bf16.mxu0 0
    %567 = vmatpush1.bf16.msra.mxu0 0
    %568 = vmatprep.subr.bf16.mxu0 0
    %569 = vmatpush1.bf16.msra.mxu0 0
    %570 = vmatprep.subr.bf16.mxu0 0
    %571 = vmatpush1.bf16.msra.mxu0 0
    %572 = vmatprep.subr.bf16.mxu0 0
    %573 = vmatpush1.bf16.msra.mxu0 0
    %574 = vmatprep.subr.bf16.mxu0 0
    %575 = vmatpush1.bf16.msra.mxu0 0
    %576 = vmatprep.subr.bf16.mxu0 0
    %577 = vmatpush1.bf16.msra.mxu0 0
    %578 = vmatprep.subr.bf16.mxu0 0
    %579 = vmatpush1.bf16.msra.mxu0 0
    %580 = vmatprep.subr.bf16.mxu0 0
    %581 = vmatpush1.bf16.msra.mxu0 0
    %582 = vmatprep.mubr.bf16.mxu0 0
    %583 = vmatmul.mubr.bf16.gmra.mrb[0].mxu0 %v545
    %v584 = vpop.f32.mrb[0].mxu0
    %v585 = vadd.f32 0.0, %v584
    %v586 = vpop.f32.mrb[0].mxu0
    %v587 = vpop.f32.mrb[0].mxu0
    %v588 = vpop.f32.mrb[0].mxu0
    %589 = vdwg.mxu0
    %v590 = vrcp.pop %v486
    %v591 = vrcp.pop %v489
    %v592 = vmul.f32 %v536, %v590
    %v593 = vmul.f32 %v585, %v591
    %v594 = vpack.c.bf16 %v593, %v592
    %596 = vrot.lane.b32.xlu0 %v594, 32
    %v597 = vpop.permute.xlu0 %596
    %vm599 = vcmask 523520
    %600 = vst.msk [vmem:[#allocation2] sm:$0xff] %vm599, %v597
    %601 = vrot.lane.b32.xlu0 %v150, 64
    %v602 = vpop.permute.xlu0 %601
    %603 = vrot.lane.b32.xlu0 %v152, 64
    %v604 = vpop.permute.xlu0 %603
    %v606 = vsel %vm62, %v602, 0
    %v609 = vsel %vm62, %v604, 0
    %611 = vmatprep.subr.bf16.mxu0 0
    %612 = vmatpush1.bf16.xpose.msra.mxu0 %v609
    %613 = vmatprep.subr.bf16.mxu0 0
    %614 = vmatpush1.bf16.xpose.msra.mxu0 0
    %615 = vmatprep.subr.bf16.mxu0 0
    %616 = vmatpush1.bf16.xpose.msra.mxu0 0
    %617 = vmatprep.subr.bf16.mxu0 0
    %618 = vmatpush1.bf16.xpose.msra.mxu0 0
    %619 = vmatprep.subr.bf16.mxu0 0
    %620 = vmatpush1.bf16.xpose.msra.mxu0 0
    %621 = vmatprep.subr.bf16.mxu0 0
    %622 = vmatpush1.bf16.xpose.msra.mxu0 0
    %623 = vmatprep.subr.bf16.mxu0 0
    %624 = vmatpush1.bf16.xpose.msra.mxu0 0
    %625 = vmatprep.subr.bf16.mxu0 0
    %626 = vmatpush1.bf16.xpose.msra.mxu0 0
    %627 = vmatprep.subr.bf16.mxu0 0
    %628 = vmatpush1.bf16.xpose.msra.mxu0 0
    %629 = vmatprep.subr.bf16.mxu0 0
    %630 = vmatpush1.bf16.xpose.msra.mxu0 0
    %631 = vmatprep.subr.bf16.mxu0 0
    %632 = vmatpush1.bf16.xpose.msra.mxu0 0
    %633 = vmatprep.subr.bf16.mxu0 0
    %634 = vmatpush1.bf16.xpose.msra.mxu0 0
    %635 = vmatprep.subr.bf16.mxu0 0
    %636 = vmatpush1.bf16.xpose.msra.mxu0 0
    %637 = vmatprep.subr.bf16.mxu0 0
    %638 = vmatpush1.bf16.xpose.msra.mxu0 0
    %639 = vmatprep.subr.bf16.mxu0 0
    %640 = vmatpush1.bf16.xpose.msra.mxu0 0
    %641 = vmatprep.subr.bf16.mxu0 0
    %642 = vmatpush1.bf16.xpose.msra.mxu0 0
    %643 = vmatprep.mubr.bf16.mxu0 0
    %644 = vmatmul.mubr.bf16.gmra.mrb[0].mxu0 %v606
    %v645 = vpop.f32.mrb[0].mxu0
    %v646 = vadd.f32 0.0, %v645
    %v647 = vpop.f32.mrb[0].mxu0
    %v648 = vpop.f32.mrb[0].mxu0
    %v649 = vpop.f32.mrb[0].mxu0
    %650 = vdwg.mxu0
    %651 = vrot.lane.b32.xlu0 %v151, 64
    %v652 = vpop.permute.xlu0 %651
    %653 = vrot.lane.b32.xlu0 %v153, 64
    %v654 = vpop.permute.xlu0 %653
    %v656 = vsel %vm62, %v652, 0
    %v659 = vsel %vm62, %v654, 0
    %661 = vmatprep.subr.bf16.mxu0 0
    %662 = vmatpush1.bf16.xpose.msra.mxu0 %v659
    %663 = vmatprep.subr.bf16.mxu0 0
    %664 = vmatpush1.bf16.xpose.msra.mxu0 0
    %665 = vmatprep.subr.bf16.mxu0 0
    %666 = vmatpush1.bf16.xpose.msra.mxu0 0
    %667 = vmatprep.subr.bf16.mxu0 0
    %668 = vmatpush1.bf16.xpose.msra.mxu0 0
    %669 = vmatprep.subr.bf16.mxu0 0
    %670 = vmatpush1.bf16.xpose.msra.mxu0 0
    %671 = vmatprep.subr.bf16.mxu0 0
    %672 = vmatpush1.bf16.xpose.msra.mxu0 0
    %673 = vmatprep.subr.bf16.mxu0 0
    %674 = vmatpush1.bf16.xpose.msra.mxu0 0
    %675 = vmatprep.subr.bf16.mxu0 0
    %676 = vmatpush1.bf16.xpose.msra.mxu0 0
    %677 = vmatprep.subr.bf16.mxu0 0
    %678 = vmatpush1.bf16.xpose.msra.mxu0 0
    %679 = vmatprep.subr.bf16.mxu0 0
    %680 = vmatpush1.bf16.xpose.msra.mxu0 0
    %681 = vmatprep.subr.bf16.mxu0 0
    %682 = vmatpush1.bf16.xpose.msra.mxu0 0
    %683 = vmatprep.subr.bf16.mxu0 0
    %684 = vmatpush1.bf16.xpose.msra.mxu0 0
    %685 = vmatprep.subr.bf16.mxu0 0
    %686 = vmatpush1.bf16.xpose.msra.mxu0 0
    %687 = vmatprep.subr.bf16.mxu0 0
    %688 = vmatpush1.bf16.xpose.msra.mxu0 0
    %689 = vmatprep.subr.bf16.mxu0 0
    %690 = vmatpush1.bf16.xpose.msra.mxu0 0
    %691 = vmatprep.subr.bf16.mxu0 0
    %692 = vmatpush1.bf16.xpose.msra.mxu0 0
    %693 = vmatprep.mubr.bf16.mxu0 0
    %694 = vmatmul.mubr.bf16.gmra.mrb[0].mxu0 %v656
    %v695 = vpop.f32.mrb[0].mxu0
    %v696 = vadd.f32 0.0, %v695
    %v697 = vpop.f32.mrb[0].mxu0
    %v698 = vpop.f32.mrb[0].mxu0
    %v699 = vpop.f32.mrb[0].mxu0
    %700 = vdwg.mxu0
    %v701 = vsel %vm248, %v646, -inf
    %702 = vmax.xlane.f32.xlu0 %v701
    %v703 = vpop.xlane.xlu0 %702
    %v704 = vsel %vm248, %v696, -inf
    %705 = vmax.xlane.f32.xlu0 %v704
    %v706 = vpop.xlane.xlu0 %705
    %v707 = vsub.f32 %v646, %v703
    %v708 = vsub.f32 %v696, %v706
    %v709 = vmul.f32 %v707, 1.442695
    %v710 = vpow.pop %v709
    %v711 = vmul.f32 %v708, 1.442695
    %v712 = vpow.pop %v711
    %v713 = vsel %vm248, %v710, 0.0
    %714 = vadd.xlane.f32.xlu0 %v713
    %v715 = vpop.xlane.xlu0 %714
    %v716 = vsel %vm248, %v712, 0.0
    %717 = vadd.xlane.f32.xlu0 %v716
    %v718 = vpop.xlane.xlu0 %717
    %v719 = vpack.c.bf16 %v710, %v710
    %v720 = vpack.c.bf16 %v712, %v712
    %721 = vrot.lane.b32.xlu0 %v154, 64
    %v722 = vpop.permute.xlu0 %721
    %v724 = vsel %vm248, %v719, 0
    %v727 = vsel %vm272, %v722, 0
    %729 = vmatprep.subr.bf16.mxu0 0
    %730 = vmatpush1.bf16.msra.mxu0 %v727
    %731 = vmatprep.subr.bf16.mxu0 0
    %732 = vmatpush1.bf16.msra.mxu0 0
    %733 = vmatprep.subr.bf16.mxu0 0
    %734 = vmatpush1.bf16.msra.mxu0 0
    %735 = vmatprep.subr.bf16.mxu0 0
    %736 = vmatpush1.bf16.msra.mxu0 0
    %737 = vmatprep.subr.bf16.mxu0 0
    %738 = vmatpush1.bf16.msra.mxu0 0
    %739 = vmatprep.subr.bf16.mxu0 0
    %740 = vmatpush1.bf16.msra.mxu0 0
    %741 = vmatprep.subr.bf16.mxu0 0
    %742 = vmatpush1.bf16.msra.mxu0 0
    %743 = vmatprep.subr.bf16.mxu0 0
    %744 = vmatpush1.bf16.msra.mxu0 0
    %745 = vmatprep.subr.bf16.mxu0 0
    %746 = vmatpush1.bf16.msra.mxu0 0
    %747 = vmatprep.subr.bf16.mxu0 0
    %748 = vmatpush1.bf16.msra.mxu0 0
    %749 = vmatprep.subr.bf16.mxu0 0
    %750 = vmatpush1.bf16.msra.mxu0 0
    %751 = vmatprep.subr.bf16.mxu0 0
    %752 = vmatpush1.bf16.msra.mxu0 0
    %753 = vmatprep.subr.bf16.mxu0 0
    %754 = vmatpush1.bf16.msra.mxu0 0
    %755 = vmatprep.subr.bf16.mxu0 0
    %756 = vmatpush1.bf16.msra.mxu0 0
    %757 = vmatprep.subr.bf16.mxu0 0
    %758 = vmatpush1.bf16.msra.mxu0 0
    %759 = vmatprep.subr.bf16.mxu0 0
    %760 = vmatpush1.bf16.msra.mxu0 0
    %761 = vmatprep.mubr.bf16.mxu0 0
    %762 = vmatmul.mubr.bf16.gmra.mrb[0].mxu0 %v724
    %v763 = vpop.f32.mrb[0].mxu0
    %v764 = vadd.f32 0.0, %v763
    %v765 = vpop.f32.mrb[0].mxu0
    %v766 = vpop.f32.mrb[0].mxu0
    %v767 = vpop.f32.mrb[0].mxu0
    %768 = vdwg.mxu0
    %769 = vrot.lane.b32.xlu0 %v155, 64
    %v770 = vpop.permute.xlu0 %769
    %v772 = vsel %vm248, %v720, 0
    %v775 = vsel %vm272, %v770, 0
    %777 = vmatprep.subr.bf16.mxu0 0
    %778 = vmatpush1.bf16.msra.mxu0 %v775
    %779 = vmatprep.subr.bf16.mxu0 0
    %780 = vmatpush1.bf16.msra.mxu0 0
    %781 = vmatprep.subr.bf16.mxu0 0
    %782 = vmatpush1.bf16.msra.mxu0 0
    %783 = vmatprep.subr.bf16.mxu0 0
    %784 = vmatpush1.bf16.msra.mxu0 0
    %785 = vmatprep.subr.bf16.mxu0 0
    %786 = vmatpush1.bf16.msra.mxu0 0
    %787 = vmatprep.subr.bf16.mxu0 0
    %788 = vmatpush1.bf16.msra.mxu0 0
    %789 = vmatprep.subr.bf16.mxu0 0
    %790 = vmatpush1.bf16.msra.mxu0 0
    %791 = vmatprep.subr.bf16.mxu0 0
    %792 = vmatpush1.bf16.msra.mxu0 0
    %793 = vmatprep.subr.bf16.mxu0 0
    %794 = vmatpush1.bf16.msra.mxu0 0
    %795 = vmatprep.subr.bf16.mxu0 0
    %796 = vmatpush1.bf16.msra.mxu0 0
    %797 = vmatprep.subr.bf16.mxu0 0
    %798 = vmatpush1.bf16.msra.mxu0 0
    %799 = vmatprep.subr.bf16.mxu0 0
    %800 = vmatpush1.bf16.msra.mxu0 0
    %801 = vmatprep.subr.bf16.mxu0 0
    %802 = vmatpush1.bf16.msra.mxu0 0
    %803 = vmatprep.subr.bf16.mxu0 0
    %804 = vmatpush1.bf16.msra.mxu0 0
    %805 = vmatprep.subr.bf16.mxu0 0
    %806 = vmatpush1.bf16.msra.mxu0 0
    %807 = vmatprep.subr.bf16.mxu0 0
    %808 = vmatpush1.bf16.msra.mxu0 0
    %809 = vmatprep.mubr.bf16.mxu0 0
    %810 = vmatmul.mubr.bf16.gmra.mrb[0].mxu0 %v772
    %v811 = vpop.f32.mrb[0].mxu0
    %v812 = vadd.f32 0.0, %v811
    %v813 = vpop.f32.mrb[0].mxu0
    %v814 = vpop.f32.mrb[0].mxu0
    %v815 = vpop.f32.mrb[0].mxu0
    %816 = vdwg.mxu0
    %v817 = vrcp.pop %v715
    %v818 = vrcp.pop %v718
    %v819 = vmul.f32 %v764, %v817
    %v820 = vmul.f32 %v812, %v818
    %v821 = vpack.c.bf16 %v820, %v819
    %823 = vrot.lane.b32.xlu0 %v821, 64
    %v824 = vpop.permute.xlu0 %823
    %vm826 = vcmask 785920
    %827 = vst.msk [vmem:[#allocation2] sm:$0xff] %vm826, %v824
    %828 = vrot.lane.b32.xlu0 %v150, 32
    %v829 = vpop.permute.xlu0 %828
    %830 = vrot.lane.b32.xlu0 %v152, 32
    %v831 = vpop.permute.xlu0 %830
    %v833 = vsel %vm62, %v829, 0
    %v836 = vsel %vm62, %v831, 0
    %838 = vmatprep.subr.bf16.mxu0 0
    %839 = vmatpush1.bf16.xpose.msra.mxu0 %v836
    %840 = vmatprep.subr.bf16.mxu0 0
    %841 = vmatpush1.bf16.xpose.msra.mxu0 0
    %842 = vmatprep.subr.bf16.mxu0 0
    %843 = vmatpush1.bf16.xpose.msra.mxu0 0
    %844 = vmatprep.subr.bf16.mxu0 0
    %845 = vmatpush1.bf16.xpose.msra.mxu0 0
    %846 = vmatprep.subr.bf16.mxu0 0
    %847 = vmatpush1.bf16.xpose.msra.mxu0 0
    %848 = vmatprep.subr.bf16.mxu0 0
    %849 = vmatpush1.bf16.xpose.msra.mxu0 0
    %850 = vmatprep.subr.bf16.mxu0 0
    %851 = vmatpush1.bf16.xpose.msra.mxu0 0
    %852 = vmatprep.subr.bf16.mxu0 0
    %853 = vmatpush1.bf16.xpose.msra.mxu0 0
    %854 = vmatprep.subr.bf16.mxu0 0
    %855 = vmatpush1.bf16.xpose.msra.mxu0 0
    %856 = vmatprep.subr.bf16.mxu0 0
    %857 = vmatpush1.bf16.xpose.msra.mxu0 0
    %858 = vmatprep.subr.bf16.mxu0 0
    %859 = vmatpush1.bf16.xpose.msra.mxu0 0
    %860 = vmatprep.subr.bf16.mxu0 0
    %861 = vmatpush1.bf16.xpose.msra.mxu0 0
    %862 = vmatprep.subr.bf16.mxu0 0
    %863 = vmatpush1.bf16.xpose.msra.mxu0 0
    %864 = vmatprep.subr.bf16.mxu0 0
    %865 = vmatpush1.bf16.xpose.msra.mxu0 0
    %866 = vmatprep.subr.bf16.mxu0 0
    %867 = vmatpush1.bf16.xpose.msra.mxu0 0
    %868 = vmatprep.subr.bf16.mxu0 0
    %869 = vmatpush1.bf16.xpose.msra.mxu0 0
    %870 = vmatprep.mubr.bf16.mxu0 0
    %871 = vmatmul.mubr.bf16.gmra.mrb[0].mxu0 %v833
    %v872 = vpop.f32.mrb[0].mxu0
    %v873 = vadd.f32 0.0, %v872
    %v874 = vpop.f32.mrb[0].mxu0
    %v875 = vpop.f32.mrb[0].mxu0
    %v876 = vpop.f32.mrb[0].mxu0
    %877 = vdwg.mxu0
    %878 = vrot.lane.b32.xlu0 %v151, 32
    %v879 = vpop.permute.xlu0 %878
    %880 = vrot.lane.b32.xlu0 %v153, 32
    %v881 = vpop.permute.xlu0 %880
    %v883 = vsel %vm62, %v879, 0
    %v886 = vsel %vm62, %v881, 0
    %888 = vmatprep.subr.bf16.mxu0 0
    %889 = vmatpush1.bf16.xpose.msra.mxu0 %v886
    %890 = vmatprep.subr.bf16.mxu0 0
    %891 = vmatpush1.bf16.xpose.msra.mxu0 0
    %892 = vmatprep.subr.bf16.mxu0 0
    %893 = vmatpush1.bf16.xpose.msra.mxu0 0
    %894 = vmatprep.subr.bf16.mxu0 0
    %895 = vmatpush1.bf16.xpose.msra.mxu0 0
    %896 = vmatprep.subr.bf16.mxu0 0
    %897 = vmatpush1.bf16.xpose.msra.mxu0 0
    %898 = vmatprep.subr.bf16.mxu0 0
    %899 = vmatpush1.bf16.xpose.msra.mxu0 0
    %900 = vmatprep.subr.bf16.mxu0 0
    %901 = vmatpush1.bf16.xpose.msra.mxu0 0
    %902 = vmatprep.subr.bf16.mxu0 0
    %903 = vmatpush1.bf16.xpose.msra.mxu0 0
    %904 = vmatprep.subr.bf16.mxu0 0
    %905 = vmatpush1.bf16.xpose.msra.mxu0 0
    %906 = vmatprep.subr.bf16.mxu0 0
    %907 = vmatpush1.bf16.xpose.msra.mxu0 0
    %908 = vmatprep.subr.bf16.mxu0 0
    %909 = vmatpush1.bf16.xpose.msra.mxu0 0
    %910 = vmatprep.subr.bf16.mxu0 0
    %911 = vmatpush1.bf16.xpose.msra.mxu0 0
    %912 = vmatprep.subr.bf16.mxu0 0
    %913 = vmatpush1.bf16.xpose.msra.mxu0 0
    %914 = vmatprep.subr.bf16.mxu0 0
    %915 = vmatpush1.bf16.xpose.msra.mxu0 0
    %916 = vmatprep.subr.bf16.mxu0 0
    %917 = vmatpush1.bf16.xpose.msra.mxu0 0
    %918 = vmatprep.subr.bf16.mxu0 0
    %919 = vmatpush1.bf16.xpose.msra.mxu0 0
    %920 = vmatprep.mubr.bf16.mxu0 0
    %921 = vmatmul.mubr.bf16.gmra.mrb[0].mxu0 %v883
    %v922 = vpop.f32.mrb[0].mxu0
    %v923 = vadd.f32 0.0, %v922
    %v924 = vpop.f32.mrb[0].mxu0
    %v925 = vpop.f32.mrb[0].mxu0
    %v926 = vpop.f32.mrb[0].mxu0
    %927 = vdwg.mxu0
    %v928 = vsel %vm248, %v873, -inf
    %929 = vmax.xlane.f32.xlu0 %v928
    %v930 = vpop.xlane.xlu0 %929
    %v931 = vsel %vm248, %v923, -inf
    %932 = vmax.xlane.f32.xlu0 %v931
    %v933 = vpop.xlane.xlu0 %932
    %v934 = vsub.f32 %v873, %v930
    %v935 = vsub.f32 %v923, %v933
    %v936 = vmul.f32 %v934, 1.442695
    %v937 = vpow.pop %v936
    %v938 = vmul.f32 %v935, 1.442695
    %v939 = vpow.pop %v938
    %v940 = vsel %vm248, %v937, 0.0
    %941 = vadd.xlane.f32.xlu0 %v940
    %v942 = vpop.xlane.xlu0 %941
    %v943 = vsel %vm248, %v939, 0.0
    %944 = vadd.xlane.f32.xlu0 %v943
    %v945 = vpop.xlane.xlu0 %944
    %v946 = vpack.c.bf16 %v937, %v937
    %v947 = vpack.c.bf16 %v939, %v939
    %948 = vrot.lane.b32.xlu0 %v154, 32
    %v949 = vpop.permute.xlu0 %948
    %v951 = vsel %vm248, %v946, 0
    %v954 = vsel %vm272, %v949, 0
    %956 = vmatprep.subr.bf16.mxu0 0
    %957 = vmatpush1.bf16.msra.mxu0 %v954
    %958 = vmatprep.subr.bf16.mxu0 0
    %959 = vmatpush1.bf16.msra.mxu0 0
    %960 = vmatprep.subr.bf16.mxu0 0
    %961 = vmatpush1.bf16.msra.mxu0 0
    %962 = vmatprep.subr.bf16.mxu0 0
    %963 = vmatpush1.bf16.msra.mxu0 0
    %964 = vmatprep.subr.bf16.mxu0 0
    %965 = vmatpush1.bf16.msra.mxu0 0
    %966 = vmatprep.subr.bf16.mxu0 0
    %967 = vmatpush1.bf16.msra.mxu0 0
    %968 = vmatprep.subr.bf16.mxu0 0
    %969 = vmatpush1.bf16.msra.mxu0 0
    %970 = vmatprep.subr.bf16.mxu0 0
    %971 = vmatpush1.bf16.msra.mxu0 0
    %972 = vmatprep.subr.bf16.mxu0 0
    %973 = vmatpush1.bf16.msra.mxu0 0
    %974 = vmatprep.subr.bf16.mxu0 0
    %975 = vmatpush1.bf16.msra.mxu0 0
    %976 = vmatprep.subr.bf16.mxu0 0
    %977 = vmatpush1.bf16.msra.mxu0 0
    %978 = vmatprep.subr.bf16.mxu0 0
    %979 = vmatpush1.bf16.msra.mxu0 0
    %980 = vmatprep.subr.bf16.mxu0 0
    %981 = vmatpush1.bf16.msra.mxu0 0
    %982 = vmatprep.subr.bf16.mxu0 0
    %983 = vmatpush1.bf16.msra.mxu0 0
    %984 = vmatprep.subr.bf16.mxu0 0
    %985 = vmatpush1.bf16.msra.mxu0 0
    %986 = vmatprep.subr.bf16.mxu0 0
    %987 = vmatpush1.bf16.msra.mxu0 0
    %988 = vmatprep.mubr.bf16.mxu0 0
    %989 = vmatmul.mubr.bf16.gmra.mrb[0].mxu0 %v951
    %v990 = vpop.f32.mrb[0].mxu0
    %v991 = vadd.f32 0.0, %v990
    %v992 = vpop.f32.mrb[0].mxu0
    %v993 = vpop.f32.mrb[0].mxu0
    %v994 = vpop.f32.mrb[0].mxu0
    %995 = vdwg.mxu0
    %996 = vrot.lane.b32.xlu0 %v155, 32
    %v997 = vpop.permute.xlu0 %996
    %v999 = vsel %vm248, %v947, 0
    %v1002 = vsel %vm272, %v997, 0
    %1004 = vmatprep.subr.bf16.mxu0 0
    %1005 = vmatpush1.bf16.msra.mxu0 %v1002
    %1006 = vmatprep.subr.bf16.mxu0 0
    %1007 = vmatpush1.bf16.msra.mxu0 0
    %1008 = vmatprep.subr.bf16.mxu0 0
    %1009 = vmatpush1.bf16.msra.mxu0 0
    %1010 = vmatprep.subr.bf16.mxu0 0
    %1011 = vmatpush1.bf16.msra.mxu0 0
    %1012 = vmatprep.subr.bf16.mxu0 0
    %1013 = vmatpush1.bf16.msra.mxu0 0
    %1014 = vmatprep.subr.bf16.mxu0 0
    %1015 = vmatpush1.bf16.msra.mxu0 0
    %1016 = vmatprep.subr.bf16.mxu0 0
    %1017 = vmatpush1.bf16.msra.mxu0 0
    %1018 = vmatprep.subr.bf16.mxu0 0
    %1019 = vmatpush1.bf16.msra.mxu0 0
    %1020 = vmatprep.subr.bf16.mxu0 0
    %1021 = vmatpush1.bf16.msra.mxu0 0
    %1022 = vmatprep.subr.bf16.mxu0 0
    %1023 = vmatpush1.bf16.msra.mxu0 0
    %1024 = vmatprep.subr.bf16.mxu0 0
    %1025 = vmatpush1.bf16.msra.mxu0 0
    %1026 = vmatprep.subr.bf16.mxu0 0
    %1027 = vmatpush1.bf16.msra.mxu0 0
    %1028 = vmatprep.subr.bf16.mxu0 0
    %1029 = vmatpush1.bf16.msra.mxu0 0
    %1030 = vmatprep.subr.bf16.mxu0 0
    %1031 = vmatpush1.bf16.msra.mxu0 0
    %1032 = vmatprep.subr.bf16.mxu0 0
    %1033 = vmatpush1.bf16.msra.mxu0 0
    %1034 = vmatprep.subr.bf16.mxu0 0
    %1035 = vmatpush1.bf16.msra.mxu0 0
    %1036 = vmatprep.mubr.bf16.mxu0 0
    %1037 = vmatmul.mubr.bf16.gmra.mrb[0].mxu0 %v999
    %v1038 = vpop.f32.mrb[0].mxu0
    %v1039 = vadd.f32 0.0, %v1038
    %v1040 = vpop.f32.mrb[0].mxu0
    %v1041 = vpop.f32.mrb[0].mxu0
    %v1042 = vpop.f32.mrb[0].mxu0
    %1043 = vdwg.mxu0
    %v1044 = vrcp.pop %v942
    %v1045 = vrcp.pop %v945
    %v1046 = vmul.f32 %v991, %v1044
    %v1047 = vmul.f32 %v1039, %v1045
    %v1048 = vpack.c.bf16 %v1047, %v1046
    %1050 = vrot.lane.b32.xlu0 %v1048, 96
    %v1051 = vpop.permute.xlu0 %1050
    %vm1053 = vcmask 1048320
    %1054 = vst.msk [vmem:[#allocation2] sm:$0xff] %vm1053, %v1051
    %v1055 = vld [vmem:[#allocation2] sm:$0xff]
    %v1056 = vld [vmem:[%s2] sm:$0xf]
    %v1057 = vld [vmem:[%s2 + $0x4] sm:$0xf]
    %v1058 = vld [vmem:[%s2 + $0x8] sm:$0xf]
    %v1059 = vld [vmem:[%s2 + $0xc] sm:$0xf]
    %v1060 = vld [vmem:[%s2 + $0x10] sm:$0xf]
    %v1061 = vld [vmem:[%s2 + $0x14] sm:$0xf]
    %v1062 = vld [vmem:[%s2 + $0x18] sm:$0xf]
    %v1063 = vld [vmem:[%s2 + $0x1c] sm:$0xf]
    %v1064 = vld [vmem:[%s2 + $0x20] sm:$0xf]
    %v1065 = vld [vmem:[%s2 + $0x24] sm:$0xf]
    %v1066 = vld [vmem:[%s2 + $0x28] sm:$0xf]
    %v1067 = vld [vmem:[%s2 + $0x2c] sm:$0xf]
    %v1068 = vld [vmem:[%s2 + $0x30] sm:$0xf]
    %v1069 = vld [vmem:[%s2 + $0x34] sm:$0xf]
    %v1070 = vld [vmem:[%s2 + $0x38] sm:$0xf]
    %v1071 = vld [vmem:[%s2 + $0x3c] sm:$0xf]
    %v1072 = vld [vmem:[%s3] sm:$0x1]
    %v1074 = vlaneseq
    %v1075 = vshrl.u32 %v1074, 7
    %v1076 = vsub.s32 0, %v1075
    %v1077 = vrot.slane %v1072, %v1076
    %v1095 = vunpack.c.l.b16 %v1056
    %v1096 = vunpack.c.l.b16 %v1057
    %v1097 = vunpack.c.l.b16 %v1058
    %v1098 = vunpack.c.l.b16 %v1059
    %v1099 = vunpack.c.l.b16 %v1060
    %v1100 = vunpack.c.l.b16 %v1061
    %v1101 = vunpack.c.l.b16 %v1062
    %v1102 = vunpack.c.l.b16 %v1063
    %v1103 = vunpack.c.l.b16 %v1064
    %v1104 = vunpack.c.l.b16 %v1065
    %v1105 = vunpack.c.l.b16 %v1066
    %v1106 = vunpack.c.l.b16 %v1067
    %v1107 = vunpack.c.l.b16 %v1068
    %v1108 = vunpack.c.l.b16 %v1069
    %v1109 = vunpack.c.l.b16 %v1070
    %v1110 = vunpack.c.l.b16 %v1071
    %v1111 = vpack.c.b16 %v1096, %v1095
    %v1112 = vpack.c.b16 %v1098, %v1097
    %v1113 = vpack.c.b16 %v1100, %v1099
    %v1114 = vpack.c.b16 %v1102, %v1101
    %v1115 = vpack.c.b16 %v1104, %v1103
    %v1116 = vpack.c.b16 %v1106, %v1105
    %v1117 = vpack.c.b16 %v1108, %v1107
    %v1118 = vpack.c.b16 %v1110, %v1109
    %1127 = vmatprep.subr.bf16.mxu0 0
    %1128 = vmatpush1.bf16.msra.mxu0 %v1111
    %1129 = vmatprep.subr.bf16.mxu0 0
    %1130 = vmatpush1.bf16.msra.mxu0 %v1112
    %1131 = vmatprep.subr.bf16.mxu0 0
    %1132 = vmatpush1.bf16.msra.mxu0 %v1113
    %1133 = vmatprep.subr.bf16.mxu0 0
    %1134 = vmatpush1.bf16.msra.mxu0 %v1114
    %1135 = vmatprep.subr.bf16.mxu0 0
    %1136 = vmatpush1.bf16.msra.mxu0 %v1115
    %1137 = vmatprep.subr.bf16.mxu0 0
    %1138 = vmatpush1.bf16.msra.mxu0 %v1116
    %1139 = vmatprep.subr.bf16.mxu0 0
    %1140 = vmatpush1.bf16.msra.mxu0 %v1117
    %1141 = vmatprep.subr.bf16.mxu0 0
    %1142 = vmatpush1.bf16.msra.mxu0 %v1118
    %1143 = vmatprep.subr.bf16.mxu0 0
    %1144 = vmatpush1.bf16.msra.mxu0 0
    %1145 = vmatprep.subr.bf16.mxu0 0
    %1146 = vmatpush1.bf16.msra.mxu0 0
    %1147 = vmatprep.subr.bf16.mxu0 0
    %1148 = vmatpush1.bf16.msra.mxu0 0
    %1149 = vmatprep.subr.bf16.mxu0 0
    %1150 = vmatpush1.bf16.msra.mxu0 0
    %1151 = vmatprep.subr.bf16.mxu0 0
    %1152 = vmatpush1.bf16.msra.mxu0 0
    %1153 = vmatprep.subr.bf16.mxu0 0
    %1154 = vmatpush1.bf16.msra.mxu0 0
    %1155 = vmatprep.subr.bf16.mxu0 0
    %1156 = vmatpush1.bf16.msra.mxu0 0
    %1157 = vmatprep.subr.bf16.mxu0 0
    %1158 = vmatpush1.bf16.msra.mxu0 0
    %1159 = vmatprep.mubr.bf16.mxu0 0
    %1160 = vmatmul.mubr.bf16.gmra.mrb[0].mxu0 %v1055
    %v1161 = vpop.f32.mrb[0].mxu0
    %v1162 = vadd.f32 %v1077, %v1161
    %v1163 = vpop.f32.mrb[0].mxu0
    %v1164 = vpop.f32.mrb[0].mxu0
    %v1165 = vadd.f32 %v1077, %v1164
    %v1166 = vpop.f32.mrb[0].mxu0
    %1167 = vdwg.mxu0
    %1168 = vst.msk [vmem:[#allocation3] sm:$0xff] %vm62, %v1162
    %1169 = vst.msk [vmem:[#allocation3 + $0x8] sm:$0xff] %vm62, %v1165
    // Predicated region
    $region18: #{self_attention_pallas.1} parent=1 // pred_check
      _
    $region19: #{self_attention_pallas.1} parent=1 // pred_check_branch
      %1171 = sbr.rel (0) target = $region21
    $region20: #{self_attention_pallas.1} parent=1 // pred_region
      %s1173 = ssub.s32 256, 256
      %1174 = vsyncadd [#allocation4], %s1173
      %s1175 = sshll.u32 [#allocation3], 4
      %s1176 = int_to_ptr.vmem [resolvable:$true] %s1175
      %1181 = dma.vmem_to_hbm [thread:$0]  %s1176, 256, %s4, [#allocation4], 128, 128, 8
    $region21: #{self_attention_pallas.1} parent=1 // pred_fallthru
      _
    // Predicated region
    $region22: #{self_attention_pallas.1} parent=1 // pred_check
      _
    $region23: #{self_attention_pallas.1} parent=1 // pred_check_branch
      %1183 = sbr.rel (0) target = $region25
    $region24: #{self_attention_pallas.1} parent=1 // pred_region
      %1184 = dma.done [#allocation4], 256
    $region25: #{self_attention_pallas.1} parent=1 // pred_fallthru
      _
    %1185 = vsyncpa [#allocation4], 1

</llo_original>
